<compile_context>
chip_gen: v6e
topology: v6e:2x2x1
jax: 0.10.0
libtpu: 0.0.40
codegen_flags: <defaults>
</compile_context>

<pallas_src>
import functools

import jax
import jax.numpy as jnp
from jax import lax
from jax.experimental import pallas as pl
from jax.experimental.pallas import tpu as pltpu

n_embd = 384       # C from the module
block_size = 256   # upper bound on T in the PyTorch module (tril buffer size)
dropout = 0.2      # TODO(synk): dropout on attention weights not applied (eval-mode identity)


def _head_flash_kernel(xq_ref, xk_ref, wq_ref, wkv_ref, o_ref,
                       q_sc, m_sc, l_sc, acc_sc, *, scale, head_size, ts):
    qi = pl.program_id(1)           # query-tile index
    kj = pl.program_id(2)           # key-tile index (reduction axis, innermost)
    nk = pl.num_programs(2)

    @pl.when(kj == 0)
    def _init():
        # Project + pre-scale the query tile once per (b, qi).
        q = jnp.dot(xq_ref[0], wq_ref[...], preferred_element_type=jnp.float32)
        q_sc[...] = (q * scale).astype(q_sc.dtype)
        m_sc[...] = jnp.full((ts, 1), -jnp.inf, dtype=jnp.float32)
        l_sc[...] = jnp.zeros((ts, 1), dtype=jnp.float32)
        acc_sc[...] = jnp.zeros((ts, head_size), dtype=jnp.float32)

    # Causal block skip: key tiles strictly after the query tile are fully masked.
    @pl.when(kj <= qi)
    def _compute():
        # Fused K/V projection: one (ts, C) x (C, 2H) bf16 MXU matmul, N = 128 lanes.
        kv = jnp.dot(xk_ref[0], wkv_ref[...], preferred_element_type=jnp.float32)
        k = kv[:, :head_size].astype(jnp.bfloat16)
        v = kv[:, head_size:].astype(jnp.bfloat16)

        # Scores: contract the head dims directly (no materialized k.T).
        s = lax.dot_general(q_sc[...], k, (((1,), (1,)), ((), ())),
                            preferred_element_type=jnp.float32)        # (ts, ts) f32

        # Causal mask; only bites on the diagonal block (kj < qi blocks are fully
        # visible). Safe wrt -inf: every row keeps >= 1 unmasked column (diagonal).
        row = lax.broadcasted_iota(jnp.int32, (ts, ts), 0) + qi * ts
        col = lax.broadcasted_iota(jnp.int32, (ts, ts), 1) + kj * ts
        s = jnp.where(col <= row, s, -jnp.inf)

        # Online softmax update, elementwise math in f32.
        m_prev = m_sc[...]
        m_new = jnp.maximum(m_prev, jnp.max(s, axis=-1, keepdims=True))
        alpha = jnp.exp(m_prev - m_new)
        p = jnp.exp(s - m_new)
        l_sc[...] = alpha * l_sc[...] + jnp.sum(p, axis=-1, keepdims=True)
        acc_sc[...] = alpha * acc_sc[...] + jnp.dot(
            p.astype(jnp.bfloat16), v, preferred_element_type=jnp.float32)
        m_sc[...] = m_new

    @pl.when(kj == nk - 1)
    def _finalize():
        inv_l = pl.reciprocal(l_sc[...], approx=True)
        o_ref[0] = (acc_sc[...] * inv_l).astype(o_ref.dtype)


def fuse_head_weights(wk, wq, wv):
    """One-time weight preparation (do this at init, NOT per forward call).

    wk, wq, wv: PyTorch-style Linear weights of shape (head_size, n_embd).
    Returns (wq_t, wkv_t): bf16 (C, H) and bf16 (C, 2H) with K and V fused.
    """
    wq_t = jnp.asarray(wq).T.astype(jnp.bfloat16)
    wkv_t = jnp.concatenate([jnp.asarray(wk).T, jnp.asarray(wv).T],
                            axis=1).astype(jnp.bfloat16)
    return wq_t, wkv_t


def head_forward(x, wq_t, wkv_t):
    """Single causal attention head (eval mode).

    x     : (B, T, C) float32, T <= block_size, T a multiple of 8
    wq_t  : (C, H) bf16, wkv_t : (C, 2H) bf16  (from fuse_head_weights)
    returns (B, T, H) in x.dtype
    """
    B, T, C = x.shape
    H = wq_t.shape[1]
    assert C == n_embd and wkv_t.shape == (C, 2 * H)
    assert T <= block_size and T % 8 == 0

    # NOTE: matches the PyTorch module, which scales by C**-0.5 (n_embd),
    # not the standard head_size**-0.5.
    scale = float(C) ** (-0.5)

    ts = T if T <= 128 else 128          # query/key tile length
    assert T % ts == 0
    nt = T // ts

    x_bf = x.astype(jnp.bfloat16)        # bf16 MXU operands; halves x DMA bytes

    kernel = functools.partial(_head_flash_kernel,
                               scale=scale, head_size=H, ts=ts)

    return pl.pallas_call(
        kernel,
        out_shape=jax.ShapeDtypeStruct((B, T, H), x.dtype),
        grid_spec=pltpu.PrefetchScalarGridSpec(
            num_scalar_prefetch=0,
            grid=(B, nt, nt),
            in_specs=[
                pl.BlockSpec((1, ts, C), lambda b, qi, kj: (b, qi, 0)),   # query rows
                pl.BlockSpec((1, ts, C), lambda b, qi, kj: (b, kj, 0)),   # key/value rows
                pl.BlockSpec((C, H), lambda b, qi, kj: (0, 0)),           # Wq
                pl.BlockSpec((C, 2 * H), lambda b, qi, kj: (0, 0)),       # fused Wkv
            ],
            out_specs=pl.BlockSpec((1, ts, H), lambda b, qi, kj: (b, qi, 0)),
            scratch_shapes=[
                pltpu.VMEM((ts, H), jnp.bfloat16),   # pre-scaled q (persists over kj)
                pltpu.VMEM((ts, 1), jnp.float32),    # running max
                pltpu.VMEM((ts, 1), jnp.float32),    # running denominator
                pltpu.VMEM((ts, H), jnp.float32),    # output accumulator
            ],
        ),
        compiler_params=pltpu.CompilerParams(
            # two parallel axes -> both v7x TensorCores get work even for small B;
            # reduction (key) axis last and "arbitrary".
            dimension_semantics=("parallel", "parallel", "arbitrary")),
    )(x_bf, x_bf, wq_t, wkv_t)


def _reference(x, wk, wq, wv):
    B, T, C = x.shape
    k = x @ wk.T
    q = x @ wq.T
    v = x @ wv.T
    wei = (q @ jnp.swapaxes(k, -2, -1)) * (C ** -0.5)
    mask = jnp.tril(jnp.ones((T, T), bool))
    wei = jnp.where(mask, wei, -jnp.inf)
    wei = jax.nn.softmax(wei, axis=-1)
    return wei @ v


if __name__ == "__main__":
    key = jax.random.PRNGKey(0)
    C, H = n_embd, 64
    kx, kk, kq, kv = jax.random.split(key, 4)

    s = (1.0 / C) ** 0.5
    wk = jax.random.uniform(kk, (H, C), jnp.float32, -s, s)
    wq = jax.random.uniform(kq, (H, C), jnp.float32, -s, s)
    wv = jax.random.uniform(kv, (H, C), jnp.float32, -s, s)

    # One-time weight fusion (init time), not inside the per-call path.
    wq_t, wkv_t = fuse_head_weights(wk, wq, wv)

    # Small shape (single tile per batch) and full block_size shape
    # (two query tiles: exercises online softmax + causal block skipping).
    for (B, T) in [(2, 16), (2, block_size)]:
        x = jax.random.normal(kx, (B, T, C), dtype=jnp.float32)
        out = head_forward(x, wq_t, wkv_t)
        jax.block_until_ready(out)

        ref = _reference(x, wk, wq, wv)
        assert out.shape == (B, T, H)
        # bf16 MXU operands (f32 accumulation) vs a pure-f32 reference
        err = float(jnp.max(jnp.abs(out - ref)))
        assert jnp.allclose(out, ref, atol=2e-2, rtol=2e-2), err

    print("KERNEL_OK")
</pallas_src>

<mosaic_0001>
module attributes {stable_mosaic.version = 11 : i64} {
  func.func @_head_flash_kernel(%arg0: i32, %arg1: i32, %arg2: i32, %arg3: memref<1x16x384xbf16, #tpu.memory_space<vmem>>, %arg4: memref<1x16x384xbf16, #tpu.memory_space<vmem>>, %arg5: memref<384x64xbf16, #tpu.memory_space<vmem>>, %arg6: memref<384x128xbf16, #tpu.memory_space<vmem>>, %arg7: memref<1x16x64xf32, #tpu.memory_space<vmem>>, %arg8: memref<16x64xbf16, #tpu.memory_space<vmem>>, %arg9: memref<16x1xf32, #tpu.memory_space<vmem>>, %arg10: memref<16x1xf32, #tpu.memory_space<vmem>>, %arg11: memref<16x64xf32, #tpu.memory_space<vmem>>) attributes {dimension_semantics = [#tpu.dimension_semantics<parallel>, #tpu.dimension_semantics<parallel>, #tpu.dimension_semantics<arbitrary>], iteration_bounds = array<i64: 2, 1, 1>, scalar_prefetch = 0 : i64, scratch_operands = 4 : i64, tpu.core_type = #tpu.core_type<tc>, window_params = [{transform_indices = @transform_0, window_bounds = array<i64: 1, 16, 384>}, {transform_indices = @transform_1, window_bounds = array<i64: 1, 16, 384>}, {pipeline_mode = #tpu.pipeline_mode<synchronous>, transform_indices = @transform_2, window_bounds = array<i64: 384, 64>}, {pipeline_mode = #tpu.pipeline_mode<synchronous>, transform_indices = @transform_3, window_bounds = array<i64: 384, 128>}, {transform_indices = @transform_4, window_bounds = array<i64: 1, 16, 64>}]} {
    %c0_i32 = arith.constant 0 : i32
    %0 = arith.cmpi eq, %arg2, %c0_i32 : i32
    %1 = arith.extui %0 : i1 to i32
    %c0_i32_0 = arith.constant 0 : i32
    %2 = arith.cmpi ne, %1, %c0_i32_0 : i32
    scf.if %2 {
      %c0 = arith.constant 0 : index
      %c0_4 = arith.constant 0 : index
      %c0_5 = arith.constant 0 : index
      %9 = vector.load %arg3[%c0, %c0_4, %c0_5] : memref<1x16x384xbf16, #tpu.memory_space<vmem>>, vector<1x16x384xbf16>
      %10 = vector.shape_cast %9 : vector<1x16x384xbf16> to vector<16x384xbf16>
      %c0_6 = arith.constant 0 : index
      %c0_7 = arith.constant 0 : index
      %11 = vector.load %arg5[%c0_6, %c0_7] : memref<384x64xbf16, #tpu.memory_space<vmem>>, vector<384x64xbf16>
      %cst = arith.constant dense<0.000000e+00> : vector<16x64xf32>
      %12 = tpu.matmul %10, %11, %cst {dimension_numbers = #tpu.dot_dimension_numbers<[1], [0], [0], [1], [0, 0, 1, 1], [], []>} : vector<16x384xbf16>, vector<384x64xbf16>, vector<16x64xf32> -> vector<16x64xf32>
      %cst_8 = arith.constant 0.0510310382 : f32
      %13 = vector.broadcast %cst_8 : f32 to vector<16x64xf32>
      %14 = arith.mulf %12, %13 : vector<16x64xf32>
      %15 = arith.truncf %14 : vector<16x64xf32> to vector<16x64xbf16>
      %c0_9 = arith.constant 0 : index
      %c0_10 = arith.constant 0 : index
      %16 = vector.load %arg8[%c0_9, %c0_10] : memref<16x64xbf16, #tpu.memory_space<vmem>>, vector<16x64xbf16>
      tpu.vector_store %arg8[%c0_9, %c0_10], %15 {strides = array<i32>} : memref<16x64xbf16, #tpu.memory_space<vmem>>, vector<16x64xbf16>,
      %cst_11 = arith.constant 0xFF800000 : f32
      %17 = vector.broadcast %cst_11 : f32 to vector<16x1xf32>
      %c0_12 = arith.constant 0 : index
      %c0_13 = arith.constant 0 : index
      %18 = vector.load %arg9[%c0_12, %c0_13] : memref<16x1xf32, #tpu.memory_space<vmem>>, vector<16x1xf32>
      tpu.vector_store %arg9[%c0_12, %c0_13], %17 {strides = array<i32>} : memref<16x1xf32, #tpu.memory_space<vmem>>, vector<16x1xf32>,
      %cst_14 = arith.constant 0.000000e+00 : f32
      %19 = vector.broadcast %cst_14 : f32 to vector<16x1xf32>
      %c0_15 = arith.constant 0 : index
      %c0_16 = arith.constant 0 : index
      %20 = vector.load %arg10[%c0_15, %c0_16] : memref<16x1xf32, #tpu.memory_space<vmem>>, vector<16x1xf32>
      tpu.vector_store %arg10[%c0_15, %c0_16], %19 {strides = array<i32>} : memref<16x1xf32, #tpu.memory_space<vmem>>, vector<16x1xf32>,
      %cst_17 = arith.constant 0.000000e+00 : f32
      %21 = vector.broadcast %cst_17 : f32 to vector<16x64xf32>
      %c0_18 = arith.constant 0 : index
      %c0_19 = arith.constant 0 : index
      %22 = vector.load %arg11[%c0_18, %c0_19] : memref<16x64xf32, #tpu.memory_space<vmem>>, vector<16x64xf32>
      tpu.vector_store %arg11[%c0_18, %c0_19], %21 {strides = array<i32>} : memref<16x64xf32, #tpu.memory_space<vmem>>, vector<16x64xf32>,
    } else {
    }
    %3 = arith.cmpi sle, %arg2, %arg1 : i32
    %4 = arith.extui %3 : i1 to i32
    %c0_i32_1 = arith.constant 0 : i32
    %5 = arith.cmpi ne, %4, %c0_i32_1 : i32
    scf.if %5 {
      %c0 = arith.constant 0 : index
      %c0_4 = arith.constant 0 : index
      %c0_5 = arith.constant 0 : index
      %9 = vector.load %arg4[%c0, %c0_4, %c0_5] : memref<1x16x384xbf16, #tpu.memory_space<vmem>>, vector<1x16x384xbf16>
      %10 = vector.shape_cast %9 : vector<1x16x384xbf16> to vector<16x384xbf16>
      %c0_6 = arith.constant 0 : index
      %c0_7 = arith.constant 0 : index
      %11 = vector.load %arg6[%c0_6, %c0_7] : memref<384x128xbf16, #tpu.memory_space<vmem>>, vector<384x128xbf16>
      %cst = arith.constant dense<0.000000e+00> : vector<16x128xf32>
      %12 = tpu.matmul %10, %11, %cst {dimension_numbers = #tpu.dot_dimension_numbers<[1], [0], [0], [1], [0, 0, 1, 1], [], []>} : vector<16x384xbf16>, vector<384x128xbf16>, vector<16x128xf32> -> vector<16x128xf32>
      %13 = vector.extract_strided_slice %12 {offsets = [0, 0], sizes = [16, 64], strides = [1, 1]} : vector<16x128xf32> to vector<16x64xf32>
      %14 = arith.truncf %13 : vector<16x64xf32> to vector<16x64xbf16>
      %15 = vector.extract_strided_slice %12 {offsets = [0, 64], sizes = [16, 64], strides = [1, 1]} : vector<16x128xf32> to vector<16x64xf32>
      %16 = arith.truncf %15 : vector<16x64xf32> to vector<16x64xbf16>
      %c0_8 = arith.constant 0 : index
      %c0_9 = arith.constant 0 : index
      %17 = vector.load %arg8[%c0_8, %c0_9] : memref<16x64xbf16, #tpu.memory_space<vmem>>, vector<16x64xbf16>
      %cst_10 = arith.constant dense<0.000000e+00> : vector<16x16xf32>
      %18 = tpu.matmul %17, %14, %cst_10 {dimension_numbers = #tpu.dot_dimension_numbers<[1], [1], [0], [0], [0, 0, 1, 0], [], []>} : vector<16x64xbf16>, vector<16x64xbf16>, vector<16x16xf32> -> vector<16x16xf32>
      %19 = tpu.iota {dimensions = array<i32: 0>} : vector<16x16xi32>
      %c16_i32 = arith.constant 16 : i32
      %20 = arith.muli %arg1, %c16_i32 : i32
      %21 = vector.broadcast %20 : i32 to vector<16x16xi32>
      %22 = arith.addi %19, %21 : vector<16x16xi32>
      %23 = tpu.iota {dimensions = array<i32: 1>} : vector<16x16xi32>
      %c16_i32_11 = arith.constant 16 : i32
      %24 = arith.muli %arg2, %c16_i32_11 : i32
      %25 = vector.broadcast %24 : i32 to vector<16x16xi32>
      %26 = arith.addi %23, %25 : vector<16x16xi32>
      %27 = arith.cmpi sle, %26, %22 : vector<16x16xi32>
      %cst_12 = arith.constant 0xFF800000 : f32
      %28 = vector.broadcast %cst_12 : f32 to vector<16x16xf32>
      %29 = arith.select %27, %18, %28 : vector<16x16xi1>, vector<16x16xf32>
      %c0_13 = arith.constant 0 : index
      %c0_14 = arith.constant 0 : index
      %30 = vector.load %arg9[%c0_13, %c0_14] : memref<16x1xf32, #tpu.memory_space<vmem>>, vector<16x1xf32>
      %cst_15 = arith.constant dense<0xFF800000> : vector<16xf32>
      %31 = vector.multi_reduction <maximumf>, %29, %cst_15 [1] : vector<16x16xf32> to vector<16xf32>
      %32 = vector.shape_cast %31 : vector<16xf32> to vector<16x1xf32>
      %33 = arith.maximumf %30, %32 : vector<16x1xf32>
      %34 = arith.subf %30, %33 : vector<16x1xf32>
      %35 = math.exp %34 : vector<16x1xf32>
      %36 = vector.broadcast %33 : vector<16x1xf32> to vector<16x16xf32>
      %37 = arith.subf %29, %36 : vector<16x16xf32>
      %38 = math.exp %37 : vector<16x16xf32>
      %c0_16 = arith.constant 0 : index
      %c0_17 = arith.constant 0 : index
      %39 = vector.load %arg10[%c0_16, %c0_17] : memref<16x1xf32, #tpu.memory_space<vmem>>, vector<16x1xf32>
      %40 = arith.mulf %35, %39 : vector<16x1xf32>
      %cst_18 = arith.constant dense<0.000000e+00> : vector<16xf32>
      %41 = vector.multi_reduction <add>, %38, %cst_18 [1] : vector<16x16xf32> to vector<16xf32>
      %42 = vector.shape_cast %41 : vector<16xf32> to vector<16x1xf32>
      %43 = arith.addf %40, %42 : vector<16x1xf32>
      %c0_19 = arith.constant 0 : index
      %c0_20 = arith.constant 0 : index
      %44 = vector.load %arg10[%c0_19, %c0_20] : memref<16x1xf32, #tpu.memory_space<vmem>>, vector<16x1xf32>
      tpu.vector_store %arg10[%c0_19, %c0_20], %43 {strides = array<i32>} : memref<16x1xf32, #tpu.memory_space<vmem>>, vector<16x1xf32>,
      %c0_21 = arith.constant 0 : index
      %c0_22 = arith.constant 0 : index
      %45 = vector.load %arg11[%c0_21, %c0_22] : memref<16x64xf32, #tpu.memory_space<vmem>>, vector<16x64xf32>
      %46 = vector.broadcast %35 : vector<16x1xf32> to vector<16x64xf32>
      %47 = arith.mulf %46, %45 : vector<16x64xf32>
      %48 = arith.truncf %38 : vector<16x16xf32> to vector<16x16xbf16>
      %cst_23 = arith.constant dense<0.000000e+00> : vector<16x64xf32>
      %49 = tpu.matmul %48, %16, %cst_23 {dimension_numbers = #tpu.dot_dimension_numbers<[1], [0], [0], [1], [0, 0, 1, 1], [], []>} : vector<16x16xbf16>, vector<16x64xbf16>, vector<16x64xf32> -> vector<16x64xf32>
      %50 = arith.addf %47, %49 : vector<16x64xf32>
      %c0_24 = arith.constant 0 : index
      %c0_25 = arith.constant 0 : index
      %51 = vector.load %arg11[%c0_24, %c0_25] : memref<16x64xf32, #tpu.memory_space<vmem>>, vector<16x64xf32>
      tpu.vector_store %arg11[%c0_24, %c0_25], %50 {strides = array<i32>} : memref<16x64xf32, #tpu.memory_space<vmem>>, vector<16x64xf32>,
      %c0_26 = arith.constant 0 : index
      %c0_27 = arith.constant 0 : index
      %52 = vector.load %arg9[%c0_26, %c0_27] : memref<16x1xf32, #tpu.memory_space<vmem>>, vector<16x1xf32>
      tpu.vector_store %arg9[%c0_26, %c0_27], %33 {strides = array<i32>} : memref<16x1xf32, #tpu.memory_space<vmem>>, vector<16x1xf32>,
    } else {
    }
    %c0_i32_2 = arith.constant 0 : i32
    %6 = arith.cmpi eq, %arg2, %c0_i32_2 : i32
    %7 = arith.extui %6 : i1 to i32
    %c0_i32_3 = arith.constant 0 : i32
    %8 = arith.cmpi ne, %7, %c0_i32_3 : i32
    scf.if %8 {
      %c0 = arith.constant 0 : index
      %c0_4 = arith.constant 0 : index
      %9 = vector.load %arg10[%c0, %c0_4] : memref<16x1xf32, #tpu.memory_space<vmem>>, vector<16x1xf32>
      %10 = tpu.reciprocal %9 {approx = true} : vector<16x1xf32> -> vector<16x1xf32>
      %c0_5 = arith.constant 0 : index
      %c0_6 = arith.constant 0 : index
      %11 = vector.load %arg11[%c0_5, %c0_6] : memref<16x64xf32, #tpu.memory_space<vmem>>, vector<16x64xf32>
      %12 = vector.broadcast %10 : vector<16x1xf32> to vector<16x64xf32>
      %13 = arith.mulf %11, %12 : vector<16x64xf32>
      %c0_7 = arith.constant 0 : index
      %c0_8 = arith.constant 0 : index
      %c0_9 = arith.constant 0 : index
      %14 = vector.load %arg7[%c0_7, %c0_8, %c0_9] : memref<1x16x64xf32, #tpu.memory_space<vmem>>, vector<1x16x64xf32>
      %15 = vector.shape_cast %14 : vector<1x16x64xf32> to vector<16x64xf32>
      %16 = vector.shape_cast %13 : vector<16x64xf32> to vector<1x16x64xf32>
      tpu.vector_store %arg7[%c0_7, %c0_8, %c0_9], %16 {strides = array<i32>} : memref<1x16x64xf32, #tpu.memory_space<vmem>>, vector<1x16x64xf32>,
    } else {
    }
    return
  }
  func.func @transform_0(%arg0: i32, %arg1: i32, %arg2: i32) -> (i32, i32, i32) {
    %c0_i32 = arith.constant 0 : i32
    %c0_i32_0 = arith.constant 0 : i32
    return %arg0, %arg1, %c0_i32 : i32, i32, i32
  }
  func.func @transform_1(%arg0: i32, %arg1: i32, %arg2: i32) -> (i32, i32, i32) {
    %c0_i32 = arith.constant 0 : i32
    %c0_i32_0 = arith.constant 0 : i32
    return %arg0, %arg2, %c0_i32 : i32, i32, i32
  }
  func.func @transform_2(%arg0: i32, %arg1: i32, %arg2: i32) -> (i32, i32) {
    %c0_i32 = arith.constant 0 : i32
    %c0_i32_0 = arith.constant 0 : i32
    %c0_i32_1 = arith.constant 0 : i32
    return %c0_i32, %c0_i32_0 : i32, i32
  }
  func.func @transform_3(%arg0: i32, %arg1: i32, %arg2: i32) -> (i32, i32) {
    %c0_i32 = arith.constant 0 : i32
    %c0_i32_0 = arith.constant 0 : i32
    %c0_i32_1 = arith.constant 0 : i32
    return %c0_i32, %c0_i32_0 : i32, i32
  }
  func.func @transform_4(%arg0: i32, %arg1: i32, %arg2: i32) -> (i32, i32, i32) {
    %c0_i32 = arith.constant 0 : i32
    %c0_i32_0 = arith.constant 0 : i32
    return %arg0, %arg1, %c0_i32 : i32, i32, i32
  }
}

</mosaic_0001>

<llo_original>
// kernel: tpu_custom_call.1
$region0: #{tpu_custom_call.1}
  #allocation0 [shape = 'u32[]', space=smem, size = 0x4, offset = 0x4, fixed_abs, tag = 'smem constant byte address 0x4 - core index']
  #allocation1 [shape = 'u32[144,128]{1,0:T(1,128)}', space=vmem, size = 0x12000, scoped, tag = 'internal scratch']
  #allocation2 [shape = 'bf16[16,64]{1,0:T(8,128)(2,1)}', space=vmem, size = 0x1000, scoped, tag = 'scratch operand']
  #allocation3 [shape = 'f32[16,1]{1,0:T(8,128)}', space=vmem, size = 0x2000, scoped, tag = 'scratch operand']
  #allocation4 [shape = 'f32[16,1]{1,0:T(8,128)}', space=vmem, size = 0x2000, scoped, tag = 'scratch operand']
  #allocation5 [shape = 'f32[16,64]{1,0:T(8,128)}', space=vmem, size = 0x2000, scoped, tag = 'scratch operand']
  %s0 = inlined_call_operand.vmem [shape: bf16[2,16,384], index: 0, kind: input, shape index: {}]
  %s1 = inlined_call_operand.vmem [shape: bf16[2,16,384], index: 1, kind: input, shape index: {}]
  %s2 = inlined_call_operand.vmem [shape: bf16[384,64], index: 2, kind: input, shape index: {}]
  %s3 = inlined_call_operand.vmem [shape: bf16[384,128], index: 3, kind: input, shape index: {}]
  %s4 = inlined_call_operand.hbm [shape: f32[2,16,64], index: 4, kind: output, shape index: {}]
  %s5 = sld [smem:[#allocation0]]
  $region61: #{tpu_custom_call.1} parent=0
    _
  %s7 = ssub.s32 1, %s5
  %s8 = scalar_select 0, %s7, %s5
  $region1: #{tpu_custom_call.1} parent=0
    #allocation6 [shape = 'u8[16384]{0}', space=vmem, size = 0x4000, scoped, tag = 'output window, operand 0']
    #allocation7 [shape = 's32[2]{0}', space=sflag, size = 0x8, scoped, tag = 'scoped memory for tpu_custom_call.1']
    %9 = vsyncpa [#allocation7], 0
    %s10 = scalar_lea.sflag [#allocation7], 1
    %11 = vsyncpa %s10, 0
    loop: start=0, step=1, limit=4
    $region2: #{tpu_custom_call.1} parent=1 // loop_pre_header
      _
    $region3: #{tpu_custom_call.1} parent=1 // loop_header
      %s13 = sphi 0, %s17
      %p14 = scmp.ge.s32.totalorder %s13, 4
      %s20 = sphi 0, %s39
      %s21 = sphi 0, %s35
      %s22 = sphi 0, %s31
      %s23 = sphi 0, %s20
      %s24 = sphi 0, %s21
      %s25 = sphi 0, %s22
      %s26 = sphi 0, %s23
      %s27 = sphi 0, %s24
      %s28 = sphi 0, %s25
      %s44 = sphi 0, %s46
      %s47 = sphi 0, %s44
      %s48 = sphi 0, %s47
      %s64 = sphi 0, %s48
      %s72 = sphi 0, %s74
      %s75 = sphi 0, %s72
      %s76 = sphi 0, %s75
      %s92 = sphi 0, %s76
      %s96 = sphi 0, %s96
      %s98 = sphi 0, %s96
      %s99 = sphi 0, %s98
      %s113 = sphi 0, %s99
      %s117 = sphi 0, %s117
      %s119 = sphi 0, %s117
      %s120 = sphi 0, %s119
      %s134 = sphi 0, %s120
      %s142 = sphi 0, %s144
      %s145 = sphi 0, %s142
      %s146 = sphi 0, %s145
      %s162 = sphi 0, %s146
    $region4: #{tpu_custom_call.1} parent=1 // loop_header_branch
      %16 = sbr.rel (%p14) target = $region8
    $region5: #{tpu_custom_call.1} parent=1 // loop_body
      %s18 = ssub.s32 %s13, 1
      %s19 = ssub.s32 %s13, 2
      %s29 = sadd.s32 1, %s22
      %p30 = scmp.ge.s32.totalorder %s29, 1
      %s31 = scalar_select %p30, 0, %s29
      %s32 = sadd.s32 1, %s21
      %s33 = scalar_select %p30, %s32, %s21
      %p34 = scmp.ge.s32.totalorder %s33, 1
      %s35 = scalar_select %p34, 0, %s33
      %s36 = sadd.s32 1, %s20
      %s37 = scalar_select %p34, %s36, %s20
      %p38 = scmp.ge.s32.totalorder %s37, 2
      %s39 = scalar_select %p38, 0, %s37
      %s40 = ssub.s32 %s20, %s39
      %s41 = ssub.s32 %s21, %s35
      %s42 = sor.u32 %s40, %s41
      %p43 = scmp.eq.s32.totalorder %s42, 0
      %s45 = sadd.s32 %s44, 1
      %s46 = scalar_select %p43, %s44, %s45
      %p49 = pneg %p43
      %p50 = scmp.eq.s32.totalorder %s13, 1
      %p51 = por %p49, %p50
      %p52 = scmp.ne.s32.totalorder %s44, %s47
      %p53 = scmp.eq.s32.totalorder %s13, 0
      %p54 = por %p52, %p53
      %p55 = scmp.ne.s32.totalorder %s44, %s47
      %p56 = scmp.eq.s32.totalorder %s18, 1
      %p57 = por %p55, %p56
      %p58 = scmp.ne.s32.totalorder %s47, %s48
      %p59 = scmp.eq.s32.totalorder %s18, 0
      %p60 = por %p58, %p59
      %p61 = scmp.ne.s32.totalorder %s47, %s48
      %p62 = scmp.eq.s32.totalorder %s19, 1
      %p63 = por %p61, %p62
      %p65 = scmp.ne.s32.totalorder %s48, %s64
      %p66 = scmp.eq.s32.totalorder %s19, 0
      %p67 = por %p65, %p66
      %s68 = ssub.s32 %s20, %s39
      %s69 = ssub.s32 %s22, %s31
      %s70 = sor.u32 %s68, %s69
      %p71 = scmp.eq.s32.totalorder %s70, 0
      %s73 = sadd.s32 %s72, 1
      %s74 = scalar_select %p71, %s72, %s73
      %p77 = pneg %p71
      %p78 = scmp.eq.s32.totalorder %s13, 1
      %p79 = por %p77, %p78
      %p80 = scmp.ne.s32.totalorder %s72, %s75
      %p81 = scmp.eq.s32.totalorder %s13, 0
      %p82 = por %p80, %p81
      %p83 = scmp.ne.s32.totalorder %s72, %s75
      %p84 = scmp.eq.s32.totalorder %s18, 1
      %p85 = por %p83, %p84
      %p86 = scmp.ne.s32.totalorder %s75, %s76
      %p87 = scmp.eq.s32.totalorder %s18, 0
      %p88 = por %p86, %p87
      %p89 = scmp.ne.s32.totalorder %s75, %s76
      %p90 = scmp.eq.s32.totalorder %s19, 1
      %p91 = por %p89, %p90
      %p93 = scmp.ne.s32.totalorder %s76, %s92
      %p94 = scmp.eq.s32.totalorder %s19, 0
      %p95 = por %p93, %p94
      %s97 = sadd.s32 %s96, 1
      %p100 = scmp.eq.s32.totalorder %s13, 1
      %p101 = scmp.ne.s32.totalorder %s96, %s98
      %p102 = scmp.eq.s32.totalorder %s13, 0
      %p103 = por %p101, %p102
      %p104 = scmp.ne.s32.totalorder %s96, %s98
      %p105 = scmp.eq.s32.totalorder %s18, 1
      %p106 = por %p104, %p105
      %p107 = scmp.ne.s32.totalorder %s98, %s99
      %p108 = scmp.eq.s32.totalorder %s18, 0
      %p109 = por %p107, %p108
      %p110 = scmp.ne.s32.totalorder %s98, %s99
      %p111 = scmp.eq.s32.totalorder %s19, 1
      %p112 = por %p110, %p111
      %p114 = scmp.ne.s32.totalorder %s99, %s113
      %p115 = scmp.eq.s32.totalorder %s19, 0
      %p116 = por %p114, %p115
      %s118 = sadd.s32 %s117, 1
      %p121 = scmp.eq.s32.totalorder %s13, 1
      %p122 = scmp.ne.s32.totalorder %s117, %s119
      %p123 = scmp.eq.s32.totalorder %s13, 0
      %p124 = por %p122, %p123
      %p125 = scmp.ne.s32.totalorder %s117, %s119
      %p126 = scmp.eq.s32.totalorder %s18, 1
      %p127 = por %p125, %p126
      %p128 = scmp.ne.s32.totalorder %s119, %s120
      %p129 = scmp.eq.s32.totalorder %s18, 0
      %p130 = por %p128, %p129
      %p131 = scmp.ne.s32.totalorder %s119, %s120
      %p132 = scmp.eq.s32.totalorder %s19, 1
      %p133 = por %p131, %p132
      %p135 = scmp.ne.s32.totalorder %s120, %s134
      %p136 = scmp.eq.s32.totalorder %s19, 0
      %p137 = por %p135, %p136
      %s138 = ssub.s32 %s20, %s39
      %s139 = ssub.s32 %s21, %s35
      %s140 = sor.u32 %s138, %s139
      %p141 = scmp.eq.s32.totalorder %s140, 0
      %s143 = sadd.s32 %s142, 1
      %s144 = scalar_select %p141, %s142, %s143
      %p147 = pneg %p141
      %p148 = scmp.eq.s32.totalorder %s13, 1
      %p149 = por %p147, %p148
      %p150 = scmp.ne.s32.totalorder %s142, %s145
      %p151 = scmp.eq.s32.totalorder %s13, 0
      %p152 = por %p150, %p151
      %p153 = scmp.ne.s32.totalorder %s142, %s145
      %p154 = scmp.eq.s32.totalorder %s18, 1
      %p155 = por %p153, %p154
      %p156 = scmp.ne.s32.totalorder %s145, %s146
      %p157 = scmp.eq.s32.totalorder %s18, 0
      %p158 = por %p156, %p157
      %p159 = scmp.ne.s32.totalorder %s145, %s146
      %p160 = scmp.eq.s32.totalorder %s19, 1
      %p161 = por %p159, %p160
      %p163 = scmp.ne.s32.totalorder %s146, %s162
      %p164 = scmp.eq.s32.totalorder %s19, 0
      %p165 = por %p163, %p164
      %p166 = scmp.le.s32.totalorder 1, %s13
      %p167 = scmp.lt.s32.totalorder %s13, 3
      %p168 = pnand %p166, %p167
      %p169 = pneg %p168
      // Predicated region
      $region9: #{tpu_custom_call.1} parent=5 // pred_check
        _
      $region10: #{tpu_custom_call.1} parent=5 // pred_check_branch
        %171 = sbr.rel (%p168) target = $region12
      $region11: #{tpu_custom_call.1} parent=5 // pred_region
        %s172 = ssub.s32 %s13, 1
        // Predicated region
        $region13: #{tpu_custom_call.1} parent=11 // pred_check
          %p173 = pneg %p109
        $region14: #{tpu_custom_call.1} parent=11 // pred_check_branch
          %175 = sbr.rel (%p173) target = $region16
        $region15: #{tpu_custom_call.1} parent=11 // pred_region
          _
        $region16: #{tpu_custom_call.1} parent=11 // pred_fallthru
          _
        // Predicated region
        $region17: #{tpu_custom_call.1} parent=11 // pred_check
          %p176 = pneg %p130
        $region18: #{tpu_custom_call.1} parent=11 // pred_check_branch
          %178 = sbr.rel (%p176) target = $region20
        $region19: #{tpu_custom_call.1} parent=11 // pred_region
          _
        $region20: #{tpu_custom_call.1} parent=11 // pred_fallthru
          _
      $region12: #{tpu_custom_call.1} parent=5 // pred_fallthru
        _
      %p179 = scmp.lt.s32.totalorder %s13, 2
      // Predicated region
      $region21: #{tpu_custom_call.1} parent=5 // pred_check
        %p180 = pneg %p179
      $region22: #{tpu_custom_call.1} parent=5 // pred_check_branch
        %182 = sbr.rel (%p180) target = $region24
      $region23: #{tpu_custom_call.1} parent=5 // pred_region
        // Predicated region
        $region25: #{tpu_custom_call.1} parent=23 // pred_check
          %p183 = pneg %p54
        $region26: #{tpu_custom_call.1} parent=23 // pred_check_branch
          %185 = sbr.rel (%p183) target = $region28
        $region27: #{tpu_custom_call.1} parent=23 // pred_region
          %s186 = smul.u32 2, %s21
          %p187 = scmp.lt.s32.totalorder %s20, 1
          %s188 = scalar_select %p187, %s20, 1
          %p189 = scmp.lt.s32.totalorder %s186, 1
          %s190 = scalar_select %p189, %s186, 1
          %s191 = smul.addr %s190, 3
          %s192 = smul.addr %s188, 6
          %s193 = sadd.s32 %s191, %s192
          %s194 = smul.addr %s193, 4
          %s195 = scalar_lea.vmem %s0, %s194
          %s196 = smul.u32 2, %s21
        $region28: #{tpu_custom_call.1} parent=23 // pred_fallthru
          _
        // Predicated region
        $region29: #{tpu_custom_call.1} parent=23 // pred_check
          %p197 = pneg %p82
        $region30: #{tpu_custom_call.1} parent=23 // pred_check_branch
          %199 = sbr.rel (%p197) target = $region32
        $region31: #{tpu_custom_call.1} parent=23 // pred_region
          %s200 = smul.u32 2, %s22
          %p201 = scmp.lt.s32.totalorder %s20, 1
          %s202 = scalar_select %p201, %s20, 1
          %p203 = scmp.lt.s32.totalorder %s200, 1
          %s204 = scalar_select %p203, %s200, 1
          %s205 = smul.addr %s204, 3
          %s206 = smul.addr %s202, 6
          %s207 = sadd.s32 %s205, %s206
          %s208 = smul.addr %s207, 4
          %s209 = scalar_lea.vmem %s1, %s208
          %s210 = smul.u32 2, %s22
        $region32: #{tpu_custom_call.1} parent=23 // pred_fallthru
          _
      $region24: #{tpu_custom_call.1} parent=5 // pred_fallthru
        _
      %p211 = scmp.le.s32.totalorder 1, %s13
      %p212 = scmp.lt.s32.totalorder %s13, 3
      %p213 = pnand %p211, %p212
      %p214 = pneg %p213
      // Predicated region
      $region33: #{tpu_custom_call.1} parent=5 // pred_check
        _
      $region34: #{tpu_custom_call.1} parent=5 // pred_check_branch
        %216 = sbr.rel (%p213) target = $region36
      $region35: #{tpu_custom_call.1} parent=5 // pred_region
        %s217 = ssub.s32 %s13, 1
        %s218 = smul.u32 2, %s24
        %p219 = scmp.lt.s32.totalorder %s23, 1
        %s220 = scalar_select %p219, %s23, 1
        %p221 = scmp.lt.s32.totalorder %s218, 1
        %s222 = scalar_select %p221, %s218, 1
        %s223 = smul.addr %s222, 3
        %s224 = smul.addr %s220, 6
        %s225 = sadd.s32 %s223, %s224
        %s226 = smul.addr %s225, 4
        %s227 = scalar_lea.vmem %s0, %s226
        %p228 = pneg %p60
        %p229 = pneg %p57
        %s230 = smul.u32 2, %s25
        %p231 = scmp.lt.s32.totalorder %s23, 1
        %s232 = scalar_select %p231, %s23, 1
        %p233 = scmp.lt.s32.totalorder %s230, 1
        %s234 = scalar_select %p233, %s230, 1
        %s235 = smul.addr %s234, 3
        %s236 = smul.addr %s232, 6
        %s237 = sadd.s32 %s235, %s236
        %s238 = smul.addr %s237, 4
        %s239 = scalar_lea.vmem %s1, %s238
        %p240 = pneg %p88
        %p241 = pneg %p85
        %p242 = pneg %p109
        %p243 = pneg %p106
        %p244 = pneg %p130
        %p245 = pneg %p127
        %p246 = pneg %p158
        %p247 = pneg %p155
        %s248 = sand.u32 %s145, 1
        %s249 = scalar_lea.sflag [#allocation7], %s248
        %s250 = sand.u32 %s145, 1
        %s251 = smul.addr %s250, 16
        %s252 = scalar_lea.vmem [#allocation6], %s251
        %s253 = smul.u32 2, %s24
        %p254 = scmp.lt.s32.totalorder %s23, 1
        %s255 = scalar_select %p254, %s23, 1
        %p256 = scmp.lt.s32.totalorder %s253, 1
        %s257 = scalar_select %p256, %s253, 1
        %s258 = smul.addr %s257, 3
        %s259 = smul.addr %s255, 6
        %s260 = sadd.s32 %s258, %s259
        %s261 = smul.addr %s260, 4
        %s262 = scalar_lea.vmem %s0, %s261
        %s263 = smul.u32 2, %s24
        %s264 = smul.u32 2, %s25
        %p265 = scmp.lt.s32.totalorder %s23, 1
        %s266 = scalar_select %p265, %s23, 1
        %p267 = scmp.lt.s32.totalorder %s264, 1
        %s268 = scalar_select %p267, %s264, 1
        %s269 = smul.addr %s268, 3
        %s270 = smul.addr %s266, 6
        %s271 = sadd.s32 %s269, %s270
        %s272 = smul.addr %s271, 4
        %s273 = scalar_lea.vmem %s1, %s272
        %s274 = smul.u32 2, %s25
        %s275 = smul.u32 2, %s24
        %p277 = scmp.eq.s32.totalorder %s25, 0
        // Predicated region
        $region37: #{tpu_custom_call.1} parent=35 // pred_check
          %p278 = pneg %p277
        $region38: #{tpu_custom_call.1} parent=35 // pred_check_branch
          %280 = sbr.rel (%p278) target = $region40
        $region39: #{tpu_custom_call.1} parent=35 // pred_region
          %v281 = vld [vmem:[%s262] sm:$0xff]
          %v282 = vld [vmem:[%s262 + $0x8] sm:$0xf]
          %v283 = vld [vmem:[%s262 + $0xc] sm:$0xff]
          %v284 = vld [vmem:[%s262 + $0x14] sm:$0xf]
          %v285 = vld [vmem:[%s2] sm:$0xf]
          %v286 = vld [vmem:[%s2 + $0x4] sm:$0xf]
          %v287 = vld [vmem:[%s2 + $0x8] sm:$0xf]
          %v288 = vld [vmem:[%s2 + $0xc] sm:$0xf]
          %v289 = vld [vmem:[%s2 + $0x10] sm:$0xf]
          %v290 = vld [vmem:[%s2 + $0x14] sm:$0xf]
          %v291 = vld [vmem:[%s2 + $0x18] sm:$0xf]
          %v292 = vld [vmem:[%s2 + $0x1c] sm:$0xf]
          %v293 = vld [vmem:[%s2 + $0x20] sm:$0xf]
          %v294 = vld [vmem:[%s2 + $0x24] sm:$0xf]
          %v295 = vld [vmem:[%s2 + $0x28] sm:$0xf]
          %v296 = vld [vmem:[%s2 + $0x2c] sm:$0xf]
          %v297 = vld [vmem:[%s2 + $0x30] sm:$0xf]
          %v298 = vld [vmem:[%s2 + $0x34] sm:$0xf]
          %v299 = vld [vmem:[%s2 + $0x38] sm:$0xf]
          %v300 = vld [vmem:[%s2 + $0x3c] sm:$0xf]
          %v301 = vld [vmem:[%s2 + $0x40] sm:$0xf]
          %v302 = vld [vmem:[%s2 + $0x44] sm:$0xf]
          %v303 = vld [vmem:[%s2 + $0x48] sm:$0xf]
          %v304 = vld [vmem:[%s2 + $0x4c] sm:$0xf]
          %v305 = vld [vmem:[%s2 + $0x50] sm:$0xf]
          %v306 = vld [vmem:[%s2 + $0x54] sm:$0xf]
          %v307 = vld [vmem:[%s2 + $0x58] sm:$0xf]
          %v308 = vld [vmem:[%s2 + $0x5c] sm:$0xf]
          %v309 = vld [vmem:[%s2 + $0x60] sm:$0xf]
          %v310 = vld [vmem:[%s2 + $0x64] sm:$0xf]
          %v311 = vld [vmem:[%s2 + $0x68] sm:$0xf]
          %v312 = vld [vmem:[%s2 + $0x6c] sm:$0xf]
          %v313 = vld [vmem:[%s2 + $0x70] sm:$0xf]
          %v314 = vld [vmem:[%s2 + $0x74] sm:$0xf]
          %v315 = vld [vmem:[%s2 + $0x78] sm:$0xf]
          %v316 = vld [vmem:[%s2 + $0x7c] sm:$0xf]
          %v317 = vld [vmem:[%s2 + $0x80] sm:$0xf]
          %v318 = vld [vmem:[%s2 + $0x84] sm:$0xf]
          %v319 = vld [vmem:[%s2 + $0x88] sm:$0xf]
          %v320 = vld [vmem:[%s2 + $0x8c] sm:$0xf]
          %v321 = vld [vmem:[%s2 + $0x90] sm:$0xf]
          %v322 = vld [vmem:[%s2 + $0x94] sm:$0xf]
          %v323 = vld [vmem:[%s2 + $0x98] sm:$0xf]
          %v324 = vld [vmem:[%s2 + $0x9c] sm:$0xf]
          %v325 = vld [vmem:[%s2 + $0xa0] sm:$0xf]
          %v326 = vld [vmem:[%s2 + $0xa4] sm:$0xf]
          %v327 = vld [vmem:[%s2 + $0xa8] sm:$0xf]
          %v328 = vld [vmem:[%s2 + $0xac] sm:$0xf]
          %v329 = vld [vmem:[%s2 + $0xb0] sm:$0xf]
          %v330 = vld [vmem:[%s2 + $0xb4] sm:$0xf]
          %v331 = vld [vmem:[%s2 + $0xb8] sm:$0xf]
          %v332 = vld [vmem:[%s2 + $0xbc] sm:$0xf]
          %v337 = vunpack.c.l.b16 %v281
          %v338 = vunpack.c.h.b16 %v281
          %v339 = vunpack.c.l.b16 %v282
          %v340 = vunpack.c.l.b16 %v283
          %v341 = vunpack.c.h.b16 %v283
          %v342 = vunpack.c.l.b16 %v284
          %v343 = vpack.c.b16 %v340, %v337
          %v344 = vpack.c.b16 %v341, %v338
          %v345 = vpack.c.b16 %v342, %v339
          %v397 = vunpack.c.l.b16 %v285
          %v398 = vunpack.c.l.b16 %v286
          %v399 = vunpack.c.l.b16 %v287
          %v400 = vunpack.c.l.b16 %v288
          %v401 = vunpack.c.l.b16 %v289
          %v402 = vunpack.c.l.b16 %v290
          %v403 = vunpack.c.l.b16 %v291
          %v404 = vunpack.c.l.b16 %v292
          %v405 = vunpack.c.l.b16 %v293
          %v406 = vunpack.c.l.b16 %v294
          %v407 = vunpack.c.l.b16 %v295
          %v408 = vunpack.c.l.b16 %v296
          %v409 = vunpack.c.l.b16 %v297
          %v410 = vunpack.c.l.b16 %v298
          %v411 = vunpack.c.l.b16 %v299
          %v412 = vunpack.c.l.b16 %v300
          %v413 = vunpack.c.l.b16 %v301
          %v414 = vunpack.c.l.b16 %v302
          %v415 = vunpack.c.l.b16 %v303
          %v416 = vunpack.c.l.b16 %v304
          %v417 = vunpack.c.l.b16 %v305
          %v418 = vunpack.c.l.b16 %v306
          %v419 = vunpack.c.l.b16 %v307
          %v420 = vunpack.c.l.b16 %v308
          %v421 = vunpack.c.l.b16 %v309
          %v422 = vunpack.c.l.b16 %v310
          %v423 = vunpack.c.l.b16 %v311
          %v424 = vunpack.c.l.b16 %v312
          %v425 = vunpack.c.l.b16 %v313
          %v426 = vunpack.c.l.b16 %v314
          %v427 = vunpack.c.l.b16 %v315
          %v428 = vunpack.c.l.b16 %v316
          %v429 = vunpack.c.l.b16 %v317
          %v430 = vunpack.c.l.b16 %v318
          %v431 = vunpack.c.l.b16 %v319
          %v432 = vunpack.c.l.b16 %v320
          %v433 = vunpack.c.l.b16 %v321
          %v434 = vunpack.c.l.b16 %v322
          %v435 = vunpack.c.l.b16 %v323
          %v436 = vunpack.c.l.b16 %v324
          %v437 = vunpack.c.l.b16 %v325
          %v438 = vunpack.c.l.b16 %v326
          %v439 = vunpack.c.l.b16 %v327
          %v440 = vunpack.c.l.b16 %v328
          %v441 = vunpack.c.l.b16 %v329
          %v442 = vunpack.c.l.b16 %v330
          %v443 = vunpack.c.l.b16 %v331
          %v444 = vunpack.c.l.b16 %v332
          %v445 = vpack.c.b16 %v398, %v397
          %v446 = vpack.c.b16 %v400, %v399
          %v447 = vpack.c.b16 %v402, %v401
          %v448 = vpack.c.b16 %v404, %v403
          %v449 = vpack.c.b16 %v406, %v405
          %v450 = vpack.c.b16 %v408, %v407
          %v451 = vpack.c.b16 %v410, %v409
          %v452 = vpack.c.b16 %v412, %v411
          %v453 = vpack.c.b16 %v414, %v413
          %v454 = vpack.c.b16 %v416, %v415
          %v455 = vpack.c.b16 %v418, %v417
          %v456 = vpack.c.b16 %v420, %v419
          %v457 = vpack.c.b16 %v422, %v421
          %v458 = vpack.c.b16 %v424, %v423
          %v459 = vpack.c.b16 %v426, %v425
          %v460 = vpack.c.b16 %v428, %v427
          %v461 = vpack.c.b16 %v430, %v429
          %v462 = vpack.c.b16 %v432, %v431
          %v463 = vpack.c.b16 %v434, %v433
          %v464 = vpack.c.b16 %v436, %v435
          %v465 = vpack.c.b16 %v438, %v437
          %v466 = vpack.c.b16 %v440, %v439
          %v467 = vpack.c.b16 %v442, %v441
          %v468 = vpack.c.b16 %v444, %v443
          %493 = vmatprep.subr.bf16.mxu0 0
          %494 = vmatpush1.bf16.msra.mxu0 %v452
          %495 = vmatprep.subr.bf16.mxu0 0
          %496 = vmatpush1.bf16.msra.mxu0 %v451
          %497 = vmatprep.subr.bf16.mxu0 0
          %498 = vmatpush1.bf16.msra.mxu0 %v450
          %499 = vmatprep.subr.bf16.mxu0 0
          %500 = vmatpush1.bf16.msra.mxu0 %v449
          %501 = vmatprep.subr.bf16.mxu0 0
          %502 = vmatpush1.bf16.msra.mxu0 %v448
          %503 = vmatprep.subr.bf16.mxu0 0
          %504 = vmatpush1.bf16.msra.mxu0 %v447
          %505 = vmatprep.subr.bf16.mxu0 0
          %506 = vmatpush1.bf16.msra.mxu0 %v446
          %507 = vmatprep.subr.bf16.mxu0 0
          %508 = vmatpush1.bf16.msra.mxu0 %v445
          %509 = vmatprep.subr.bf16.mxu0 0
          %510 = vmatpush2.bf16.msra.mxu0 %v460
          %511 = vmatprep.subr.bf16.mxu0 0
          %512 = vmatpush2.bf16.msra.mxu0 %v459
          %513 = vmatprep.subr.bf16.mxu0 0
          %514 = vmatpush2.bf16.msra.mxu0 %v458
          %515 = vmatprep.subr.bf16.mxu0 0
          %516 = vmatpush2.bf16.msra.mxu0 %v457
          %517 = vmatprep.subr.bf16.mxu0 0
          %518 = vmatpush2.bf16.msra.mxu0 %v456
          %519 = vmatprep.subr.bf16.mxu0 0
          %520 = vmatpush2.bf16.msra.mxu0 %v455
          %521 = vmatprep.subr.bf16.mxu0 0
          %522 = vmatpush2.bf16.msra.mxu0 %v454
          %523 = vmatprep.subr.bf16.mxu0 0
          %524 = vmatpush2.bf16.msra.mxu0 %v453
          %525 = vmatprep.mubr.bf16.mxu0 %v344
          %526 = vmatmul.mubr.bf16.gmra.mxu0 %v343
          %v527 = vpop.f32.mrf.mxu0
          %v528 = vadd.f32 0.0, %v527
          %v529 = vpop.f32.mrf.mxu0
          %v530 = vpop.f32.mrf.mxu0
          %v531 = vadd.f32 0.0, %v530
          %v532 = vpop.f32.mrf.mxu0
          %533 = vdwg.mxu0
          %534 = vmatprep.subr.bf16.mxu0 0
          %535 = vmatpush1.bf16.msra.mxu0 %v468
          %536 = vmatprep.subr.bf16.mxu0 0
          %537 = vmatpush1.bf16.msra.mxu0 %v467
          %538 = vmatprep.subr.bf16.mxu0 0
          %539 = vmatpush1.bf16.msra.mxu0 %v466
          %540 = vmatprep.subr.bf16.mxu0 0
          %541 = vmatpush1.bf16.msra.mxu0 %v465
          %542 = vmatprep.subr.bf16.mxu0 0
          %543 = vmatpush1.bf16.msra.mxu0 %v464
          %544 = vmatprep.subr.bf16.mxu0 0
          %545 = vmatpush1.bf16.msra.mxu0 %v463
          %546 = vmatprep.subr.bf16.mxu0 0
          %547 = vmatpush1.bf16.msra.mxu0 %v462
          %548 = vmatprep.subr.bf16.mxu0 0
          %549 = vmatpush1.bf16.msra.mxu0 %v461
          %550 = vmatprep.subr.bf16.mxu0 0
          %551 = vmatpush2.bf16.msra.mxu0 0
          %552 = vmatprep.subr.bf16.mxu0 0
          %553 = vmatpush2.bf16.msra.mxu0 0
          %554 = vmatprep.subr.bf16.mxu0 0
          %555 = vmatpush2.bf16.msra.mxu0 0
          %556 = vmatprep.subr.bf16.mxu0 0
          %557 = vmatpush2.bf16.msra.mxu0 0
          %558 = vmatprep.subr.bf16.mxu0 0
          %559 = vmatpush2.bf16.msra.mxu0 0
          %560 = vmatprep.subr.bf16.mxu0 0
          %561 = vmatpush2.bf16.msra.mxu0 0
          %562 = vmatprep.subr.bf16.mxu0 0
          %563 = vmatpush2.bf16.msra.mxu0 0
          %564 = vmatprep.subr.bf16.mxu0 0
          %565 = vmatpush2.bf16.msra.mxu0 0
          %566 = vmatprep.mubr.bf16.mxu0 0
          %567 = vmatmul.mubr.bf16.gmra.mxu0 %v345
          %v568 = vpop.f32.mrf.mxu0
          %v569 = vadd.f32 %v528, %v568
          %v570 = vpop.f32.mrf.mxu0
          %v571 = vpop.f32.mrf.mxu0
          %v572 = vadd.f32 %v531, %v571
          %v573 = vpop.f32.mrf.mxu0
          %574 = vdwg.mxu0
          %v575 = vmul.f32 %v569, 0.05103104
          %v576 = vmul.f32 %v572, 0.05103104
          %v577 = vpack.c.bf16 %v576, %v575
          %v579 = vunpack.c.l.b16 %v577
          %v580 = vunpack.c.h.b16 %v577
          %v581 = vpack.c.b16 %v579, %v579
          %v582 = vpack.c.b16 %v580, %v580
          %vm585 = vcmask 519168
          %586 = vst.msk [vmem:[#allocation2] sm:$0xf] %vm585, %v581
          %587 = vst.msk [vmem:[#allocation2 + $0x4] sm:$0xf] %vm585, %v582
          %vm588 = vcmask 7168
          %589 = vst.msk [vmem:[#allocation3] sm:$0xff] %vm588, -inf
          %590 = vst.msk [vmem:[#allocation3 + $0x8] sm:$0xff] %vm588, -inf
          %591 = vst.msk [vmem:[#allocation4] sm:$0xff] %vm588, 0.0
          %592 = vst.msk [vmem:[#allocation4 + $0x8] sm:$0xff] %vm588, 0.0
          %vm593 = vcmask 523264
          %594 = vst.msk [vmem:[#allocation5] sm:$0xff] %vm593, 0.0
          %595 = vst.msk [vmem:[#allocation5 + $0x8] sm:$0xff] %vm593, 0.0
        $region40: #{tpu_custom_call.1} parent=35 // pred_fallthru
          _
        %p596 = scmp.le.s32.totalorder %s25, %s24
        // Predicated region
        $region41: #{tpu_custom_call.1} parent=35 // pred_check
          %p597 = pneg %p596
        $region42: #{tpu_custom_call.1} parent=35 // pred_check_branch
          %599 = sbr.rel (%p597) target = $region44
        $region43: #{tpu_custom_call.1} parent=35 // pred_region
          %v600 = vld [vmem:[%s273] sm:$0xff]
          %v601 = vld [vmem:[%s273 + $0x8] sm:$0xf]
          %v602 = vld [vmem:[%s273 + $0xc] sm:$0xff]
          %v603 = vld [vmem:[%s273 + $0x14] sm:$0xf]
          %v604 = vld [vmem:[%s3] sm:$0xf]
          %v605 = vld [vmem:[%s3 + $0x4] sm:$0xf]
          %v606 = vld [vmem:[%s3 + $0x8] sm:$0xf]
          %v607 = vld [vmem:[%s3 + $0xc] sm:$0xf]
          %v608 = vld [vmem:[%s3 + $0x10] sm:$0xf]
          %v609 = vld [vmem:[%s3 + $0x14] sm:$0xf]
          %v610 = vld [vmem:[%s3 + $0x18] sm:$0xf]
          %v611 = vld [vmem:[%s3 + $0x1c] sm:$0xf]
          %v612 = vld [vmem:[%s3 + $0x20] sm:$0xf]
          %v613 = vld [vmem:[%s3 + $0x24] sm:$0xf]
          %v614 = vld [vmem:[%s3 + $0x28] sm:$0xf]
          %v615 = vld [vmem:[%s3 + $0x2c] sm:$0xf]
          %v616 = vld [vmem:[%s3 + $0x30] sm:$0xf]
          %v617 = vld [vmem:[%s3 + $0x34] sm:$0xf]
          %v618 = vld [vmem:[%s3 + $0x38] sm:$0xf]
          %v619 = vld [vmem:[%s3 + $0x3c] sm:$0xf]
          %v620 = vld [vmem:[%s3 + $0x40] sm:$0xf]
          %v621 = vld [vmem:[%s3 + $0x44] sm:$0xf]
          %v622 = vld [vmem:[%s3 + $0x48] sm:$0xf]
          %v623 = vld [vmem:[%s3 + $0x4c] sm:$0xf]
          %v624 = vld [vmem:[%s3 + $0x50] sm:$0xf]
          %v625 = vld [vmem:[%s3 + $0x54] sm:$0xf]
          %v626 = vld [vmem:[%s3 + $0x58] sm:$0xf]
          %v627 = vld [vmem:[%s3 + $0x5c] sm:$0xf]
          %v628 = vld [vmem:[%s3 + $0x60] sm:$0xf]
          %v629 = vld [vmem:[%s3 + $0x64] sm:$0xf]
          %v630 = vld [vmem:[%s3 + $0x68] sm:$0xf]
          %v631 = vld [vmem:[%s3 + $0x6c] sm:$0xf]
          %v632 = vld [vmem:[%s3 + $0x70] sm:$0xf]
          %v633 = vld [vmem:[%s3 + $0x74] sm:$0xf]
          %v634 = vld [vmem:[%s3 + $0x78] sm:$0xf]
          %v635 = vld [vmem:[%s3 + $0x7c] sm:$0xf]
          %v636 = vld [vmem:[%s3 + $0x80] sm:$0xf]
          %v637 = vld [vmem:[%s3 + $0x84] sm:$0xf]
          %v638 = vld [vmem:[%s3 + $0x88] sm:$0xf]
          %v639 = vld [vmem:[%s3 + $0x8c] sm:$0xf]
          %v640 = vld [vmem:[%s3 + $0x90] sm:$0xf]
          %v641 = vld [vmem:[%s3 + $0x94] sm:$0xf]
          %v642 = vld [vmem:[%s3 + $0x98] sm:$0xf]
          %v643 = vld [vmem:[%s3 + $0x9c] sm:$0xf]
          %v644 = vld [vmem:[%s3 + $0xa0] sm:$0xf]
          %v645 = vld [vmem:[%s3 + $0xa4] sm:$0xf]
          %v646 = vld [vmem:[%s3 + $0xa8] sm:$0xf]
          %v647 = vld [vmem:[%s3 + $0xac] sm:$0xf]
          %v648 = vld [vmem:[%s3 + $0xb0] sm:$0xf]
          %v649 = vld [vmem:[%s3 + $0xb4] sm:$0xf]
          %v650 = vld [vmem:[%s3 + $0xb8] sm:$0xf]
          %v651 = vld [vmem:[%s3 + $0xbc] sm:$0xf]
          %v656 = vunpack.c.l.b16 %v600
          %v657 = vunpack.c.h.b16 %v600
          %v658 = vunpack.c.l.b16 %v601
          %v659 = vunpack.c.l.b16 %v602
          %v660 = vunpack.c.h.b16 %v602
          %v661 = vunpack.c.l.b16 %v603
          %v662 = vpack.c.b16 %v659, %v656
          %v663 = vpack.c.b16 %v660, %v657
          %v664 = vpack.c.b16 %v661, %v658
          %v716 = vunpack.c.l.b16 %v604
          %v717 = vunpack.c.l.b16 %v605
          %v718 = vunpack.c.l.b16 %v606
          %v719 = vunpack.c.l.b16 %v607
          %v720 = vunpack.c.l.b16 %v608
          %v721 = vunpack.c.l.b16 %v609
          %v722 = vunpack.c.l.b16 %v610
          %v723 = vunpack.c.l.b16 %v611
          %v724 = vunpack.c.l.b16 %v612
          %v725 = vunpack.c.l.b16 %v613
          %v726 = vunpack.c.l.b16 %v614
          %v727 = vunpack.c.l.b16 %v615
          %v728 = vunpack.c.l.b16 %v616
          %v729 = vunpack.c.l.b16 %v617
          %v730 = vunpack.c.l.b16 %v618
          %v731 = vunpack.c.l.b16 %v619
          %v732 = vunpack.c.l.b16 %v620
          %v733 = vunpack.c.l.b16 %v621
          %v734 = vunpack.c.l.b16 %v622
          %v735 = vunpack.c.l.b16 %v623
          %v736 = vunpack.c.l.b16 %v624
          %v737 = vunpack.c.l.b16 %v625
          %v738 = vunpack.c.l.b16 %v626
          %v739 = vunpack.c.l.b16 %v627
          %v740 = vunpack.c.l.b16 %v628
          %v741 = vunpack.c.l.b16 %v629
          %v742 = vunpack.c.l.b16 %v630
          %v743 = vunpack.c.l.b16 %v631
          %v744 = vunpack.c.l.b16 %v632
          %v745 = vunpack.c.l.b16 %v633
          %v746 = vunpack.c.l.b16 %v634
          %v747 = vunpack.c.l.b16 %v635
          %v748 = vunpack.c.l.b16 %v636
          %v749 = vunpack.c.l.b16 %v637
          %v750 = vunpack.c.l.b16 %v638
          %v751 = vunpack.c.l.b16 %v639
          %v752 = vunpack.c.l.b16 %v640
          %v753 = vunpack.c.l.b16 %v641
          %v754 = vunpack.c.l.b16 %v642
          %v755 = vunpack.c.l.b16 %v643
          %v756 = vunpack.c.l.b16 %v644
          %v757 = vunpack.c.l.b16 %v645
          %v758 = vunpack.c.l.b16 %v646
          %v759 = vunpack.c.l.b16 %v647
          %v760 = vunpack.c.l.b16 %v648
          %v761 = vunpack.c.l.b16 %v649
          %v762 = vunpack.c.l.b16 %v650
          %v763 = vunpack.c.l.b16 %v651
          %v764 = vpack.c.b16 %v717, %v716
          %v765 = vpack.c.b16 %v719, %v718
          %v766 = vpack.c.b16 %v721, %v720
          %v767 = vpack.c.b16 %v723, %v722
          %v768 = vpack.c.b16 %v725, %v724
          %v769 = vpack.c.b16 %v727, %v726
          %v770 = vpack.c.b16 %v729, %v728
          %v771 = vpack.c.b16 %v731, %v730
          %v772 = vpack.c.b16 %v733, %v732
          %v773 = vpack.c.b16 %v735, %v734
          %v774 = vpack.c.b16 %v737, %v736
          %v775 = vpack.c.b16 %v739, %v738
          %v776 = vpack.c.b16 %v741, %v740
          %v777 = vpack.c.b16 %v743, %v742
          %v778 = vpack.c.b16 %v745, %v744
          %v779 = vpack.c.b16 %v747, %v746
          %v780 = vpack.c.b16 %v749, %v748
          %v781 = vpack.c.b16 %v751, %v750
          %v782 = vpack.c.b16 %v753, %v752
          %v783 = vpack.c.b16 %v755, %v754
          %v784 = vpack.c.b16 %v757, %v756
          %v785 = vpack.c.b16 %v759, %v758
          %v786 = vpack.c.b16 %v761, %v760
          %v787 = vpack.c.b16 %v763, %v762
          %812 = vmatprep.subr.bf16.mxu0 0
          %813 = vmatpush1.bf16.msra.mxu0 %v771
          %814 = vmatprep.subr.bf16.mxu0 0
          %815 = vmatpush1.bf16.msra.mxu0 %v770
          %816 = vmatprep.subr.bf16.mxu0 0
          %817 = vmatpush1.bf16.msra.mxu0 %v769
          %818 = vmatprep.subr.bf16.mxu0 0
          %819 = vmatpush1.bf16.msra.mxu0 %v768
          %820 = vmatprep.subr.bf16.mxu0 0
          %821 = vmatpush1.bf16.msra.mxu0 %v767
          %822 = vmatprep.subr.bf16.mxu0 0
          %823 = vmatpush1.bf16.msra.mxu0 %v766
          %824 = vmatprep.subr.bf16.mxu0 0
          %825 = vmatpush1.bf16.msra.mxu0 %v765
          %826 = vmatprep.subr.bf16.mxu0 0
          %827 = vmatpush1.bf16.msra.mxu0 %v764
          %828 = vmatprep.subr.bf16.mxu0 0
          %829 = vmatpush2.bf16.msra.mxu0 %v779
          %830 = vmatprep.subr.bf16.mxu0 0
          %831 = vmatpush2.bf16.msra.mxu0 %v778
          %832 = vmatprep.subr.bf16.mxu0 0
          %833 = vmatpush2.bf16.msra.mxu0 %v777
          %834 = vmatprep.subr.bf16.mxu0 0
          %835 = vmatpush2.bf16.msra.mxu0 %v776
          %836 = vmatprep.subr.bf16.mxu0 0
          %837 = vmatpush2.bf16.msra.mxu0 %v775
          %838 = vmatprep.subr.bf16.mxu0 0
          %839 = vmatpush2.bf16.msra.mxu0 %v774
          %840 = vmatprep.subr.bf16.mxu0 0
          %841 = vmatpush2.bf16.msra.mxu0 %v773
          %842 = vmatprep.subr.bf16.mxu0 0
          %843 = vmatpush2.bf16.msra.mxu0 %v772
          %844 = vmatprep.mubr.bf16.mxu0 %v663
          %845 = vmatmul.mubr.bf16.gmra.mxu0 %v662
          %v846 = vpop.f32.mrf.mxu0
          %v847 = vadd.f32 0.0, %v846
          %v848 = vpop.f32.mrf.mxu0
          %v849 = vpop.f32.mrf.mxu0
          %v850 = vadd.f32 0.0, %v849
          %v851 = vpop.f32.mrf.mxu0
          %852 = vdwg.mxu0
          %853 = vmatprep.subr.bf16.mxu0 0
          %854 = vmatpush1.bf16.msra.mxu0 %v787
          %855 = vmatprep.subr.bf16.mxu0 0
          %856 = vmatpush1.bf16.msra.mxu0 %v786
          %857 = vmatprep.subr.bf16.mxu0 0
          %858 = vmatpush1.bf16.msra.mxu0 %v785
          %859 = vmatprep.subr.bf16.mxu0 0
          %860 = vmatpush1.bf16.msra.mxu0 %v784
          %861 = vmatprep.subr.bf16.mxu0 0
          %862 = vmatpush1.bf16.msra.mxu0 %v783
          %863 = vmatprep.subr.bf16.mxu0 0
          %864 = vmatpush1.bf16.msra.mxu0 %v782
          %865 = vmatprep.subr.bf16.mxu0 0
          %866 = vmatpush1.bf16.msra.mxu0 %v781
          %867 = vmatprep.subr.bf16.mxu0 0
          %868 = vmatpush1.bf16.msra.mxu0 %v780
          %869 = vmatprep.subr.bf16.mxu0 0
          %870 = vmatpush2.bf16.msra.mxu0 0
          %871 = vmatprep.subr.bf16.mxu0 0
          %872 = vmatpush2.bf16.msra.mxu0 0
          %873 = vmatprep.subr.bf16.mxu0 0
          %874 = vmatpush2.bf16.msra.mxu0 0
          %875 = vmatprep.subr.bf16.mxu0 0
          %876 = vmatpush2.bf16.msra.mxu0 0
          %877 = vmatprep.subr.bf16.mxu0 0
          %878 = vmatpush2.bf16.msra.mxu0 0
          %879 = vmatprep.subr.bf16.mxu0 0
          %880 = vmatpush2.bf16.msra.mxu0 0
          %881 = vmatprep.subr.bf16.mxu0 0
          %882 = vmatpush2.bf16.msra.mxu0 0
          %883 = vmatprep.subr.bf16.mxu0 0
          %884 = vmatpush2.bf16.msra.mxu0 0
          %885 = vmatprep.mubr.bf16.mxu0 0
          %886 = vmatmul.mubr.bf16.gmra.mxu0 %v664
          %v887 = vpop.f32.mrf.mxu0
          %v888 = vadd.f32 %v847, %v887
          %v889 = vpop.f32.mrf.mxu0
          %v890 = vpop.f32.mrf.mxu0
          %v891 = vadd.f32 %v850, %v890
          %v892 = vpop.f32.mrf.mxu0
          %893 = vdwg.mxu0
          %v894 = vpack.c.bf16 %v891, %v888
          %v895 = vld [vmem:[#allocation2] sm:$0xf]
          %v896 = vld [vmem:[#allocation2 + $0x4] sm:$0xf]
          %v899 = vunpack.c.l.b16 %v895
          %v900 = vunpack.c.l.b16 %v896
          %v901 = vpack.c.b16 %v900, %v899
          %vm902 = vcmask 523264
          %v904 = vsel %vm902, %v901, 0
          %v907 = vsel %vm902, %v894, 0
          %909 = vmatprep.subr.bf16.mxu0 0
          %910 = vmatpush1.bf16.xpose.msra.mxu0 0
          %911 = vmatprep.subr.bf16.mxu0 0
          %912 = vmatpush1.bf16.xpose.msra.mxu0 0
          %913 = vmatprep.subr.bf16.mxu0 0
          %914 = vmatpush1.bf16.xpose.msra.mxu0 0
          %915 = vmatprep.subr.bf16.mxu0 0
          %916 = vmatpush1.bf16.xpose.msra.mxu0 0
          %917 = vmatprep.subr.bf16.mxu0 0
          %918 = vmatpush1.bf16.xpose.msra.mxu0 0
          %919 = vmatprep.subr.bf16.mxu0 0
          %920 = vmatpush1.bf16.xpose.msra.mxu0 0
          %921 = vmatprep.subr.bf16.mxu0 0
          %922 = vmatpush1.bf16.xpose.msra.mxu0 0
          %923 = vmatprep.subr.bf16.mxu0 0
          %924 = vmatpush1.bf16.xpose.msra.mxu0 %v907
          %925 = vmatprep.subr.bf16.mxu0 0
          %926 = vmatpush2.bf16.xpose.msra.mxu0 0
          %927 = vmatprep.subr.bf16.mxu0 0
          %928 = vmatpush2.bf16.xpose.msra.mxu0 0
          %929 = vmatprep.subr.bf16.mxu0 0
          %930 = vmatpush2.bf16.xpose.msra.mxu0 0
          %931 = vmatprep.subr.bf16.mxu0 0
          %932 = vmatpush2.bf16.xpose.msra.mxu0 0
          %933 = vmatprep.subr.bf16.mxu0 0
          %934 = vmatpush2.bf16.xpose.msra.mxu0 0
          %935 = vmatprep.subr.bf16.mxu0 0
          %936 = vmatpush2.bf16.xpose.msra.mxu0 0
          %937 = vmatprep.subr.bf16.mxu0 0
          %938 = vmatpush2.bf16.xpose.msra.mxu0 0
          %939 = vmatprep.subr.bf16.mxu0 0
          %940 = vmatpush2.bf16.xpose.msra.mxu0 0
          %941 = vmatprep.mubr.bf16.mxu0 0
          %942 = vmatmul.mubr.bf16.gmra.mxu0 %v904
          %v943 = vpop.f32.mrf.mxu0
          %v944 = vadd.f32 0.0, %v943
          %v945 = vpop.f32.mrf.mxu0
          %v946 = vpop.f32.mrf.mxu0
          %v947 = vadd.f32 0.0, %v946
          %v948 = vpop.f32.mrf.mxu0
          %949 = vdwg.mxu0
          %v950 = vlaneseq
          %v951 = vshrl.u32 %v950, 7
          %v952 = vadd.s32 %v951, 8
          %s953 = smul.u32 %s24, 16
          %v954 = vstv %s953
          %v955 = vadd.s32 %v951, %v954
          %v956 = vadd.s32 %v952, %v954
          %v957 = vlaneseq
          %v958 = vand.u32 %v957, 127
          %s959 = smul.u32 %s25, 16
          %v960 = vstv %s959
          %v961 = vadd.s32 %v958, %v960
          %vm962 = vcmp.le.s32.totalorder %v961, %v955
          %vm963 = vcmp.le.s32.totalorder %v961, %v956
          %v964 = vsel %vm962, %v944, -inf
          %v965 = vsel %vm963, %v947, -inf
          %v966 = vld [vmem:[#allocation3] sm:$0xff]
          %v967 = vld [vmem:[#allocation3 + $0x8] sm:$0xff]
          %vm968 = vcmask 130048
          %v969 = vsel %vm968, %v964, -inf
          %970 = vmax.xlane.f32.xlu0 %v969
          %v971 = vpop.xlane.xlu0 %970
          %v972 = vsel %vm968, %v965, -inf
          %973 = vmax.xlane.f32.xlu0 %v972
          %v974 = vpop.xlane.xlu0 %973
          %v975 = vmax.f32 %v966, %v971
          %v976 = vmax.f32 %v967, %v974
          %v977 = vsub.f32 %v966, %v975
          %v978 = vsub.f32 %v967, %v976
          %v979 = vmul.f32 %v977, 1.442695
          %v980 = vpow.pop %v979
          %v981 = vmul.f32 %v978, 1.442695
          %v982 = vpow.pop %v981
          %984 = vset.pattern.permute.xlu0 0
          %985 = vperm.xlu0 %984, %v975
          %v986 = vpop.permute.xlu0 %985
          %989 = vset.pattern.permute.xlu0 0
          %990 = vperm.xlu0 %989, %v976
          %v991 = vpop.permute.xlu0 %990
          %v993 = vsub.f32 %v964, %v986
          %v994 = vsub.f32 %v965, %v991
          %v995 = vmul.f32 %v993, 1.442695
          %v996 = vpow.pop %v995
          %v997 = vmul.f32 %v994, 1.442695
          %v998 = vpow.pop %v997
          %v999 = vld [vmem:[#allocation4] sm:$0xff]
          %v1000 = vld [vmem:[#allocation4 + $0x8] sm:$0xff]
          %v1001 = vmul.f32 %v980, %v999
          %v1002 = vmul.f32 %v982, %v1000
          %v1003 = vsel %vm968, %v996, 0.0
          %1004 = vadd.xlane.f32.xlu0 %v1003
          %v1005 = vpop.xlane.xlu0 %1004
          %v1006 = vsel %vm968, %v998, 0.0
          %1007 = vadd.xlane.f32.xlu0 %v1006
          %v1008 = vpop.xlane.xlu0 %1007
          %v1009 = vadd.f32 %v1001, %v1005
          %v1010 = vadd.f32 %v1002, %v1008
          %vm1011 = vcmask 7168
          %1012 = vst.msk [vmem:[#allocation4] sm:$0xff] %vm1011, %v1009
          %1013 = vst.msk [vmem:[#allocation4 + $0x8] sm:$0xff] %vm1011, %v1010
          %v1014 = vld [vmem:[#allocation5] sm:$0xff]
          %v1015 = vld [vmem:[#allocation5 + $0x8] sm:$0xff]
          %1017 = vset.pattern.permute.xlu0 0
          %1018 = vperm.xlu0 %1017, %v980
          %v1019 = vpop.permute.xlu0 %1018
          %1022 = vset.pattern.permute.xlu0 0
          %1023 = vperm.xlu0 %1022, %v982
          %v1024 = vpop.permute.xlu0 %1023
          %v1026 = vmul.f32 %v1019, %v1014
          %v1027 = vmul.f32 %v1024, %v1015
          %v1028 = vpack.c.bf16 %v998, %v996
          %1030 = vrot.lane.b32.xlu0 %v894, 64
          %v1031 = vpop.permute.xlu0 %1030
          %v1034 = vsel %vm968, %v1028, 0
          %1036 = vmatprep.subr.bf16.mxu0 0
          %1037 = vmatpush1.bf16.msra.mxu0 0
          %1038 = vmatprep.subr.bf16.mxu0 0
          %1039 = vmatpush1.bf16.msra.mxu0 0
          %1040 = vmatprep.subr.bf16.mxu0 0
          %1041 = vmatpush1.bf16.msra.mxu0 0
          %1042 = vmatprep.subr.bf16.mxu0 0
          %1043 = vmatpush1.bf16.msra.mxu0 0
          %1044 = vmatprep.subr.bf16.mxu0 0
          %1045 = vmatpush1.bf16.msra.mxu0 0
          %1046 = vmatprep.subr.bf16.mxu0 0
          %1047 = vmatpush1.bf16.msra.mxu0 0
          %1048 = vmatprep.subr.bf16.mxu0 0
          %1049 = vmatpush1.bf16.msra.mxu0 0
          %1050 = vmatprep.subr.bf16.mxu0 0
          %1051 = vmatpush1.bf16.msra.mxu0 %v1031
          %1052 = vmatprep.subr.bf16.mxu0 0
          %1053 = vmatpush2.bf16.msra.mxu0 0
          %1054 = vmatprep.subr.bf16.mxu0 0
          %1055 = vmatpush2.bf16.msra.mxu0 0
          %1056 = vmatprep.subr.bf16.mxu0 0
          %1057 = vmatpush2.bf16.msra.mxu0 0
          %1058 = vmatprep.subr.bf16.mxu0 0
          %1059 = vmatpush2.bf16.msra.mxu0 0
          %1060 = vmatprep.subr.bf16.mxu0 0
          %1061 = vmatpush2.bf16.msra.mxu0 0
          %1062 = vmatprep.subr.bf16.mxu0 0
          %1063 = vmatpush2.bf16.msra.mxu0 0
          %1064 = vmatprep.subr.bf16.mxu0 0
          %1065 = vmatpush2.bf16.msra.mxu0 0
          %1066 = vmatprep.subr.bf16.mxu0 0
          %1067 = vmatpush2.bf16.msra.mxu0 0
          %1068 = vmatprep.mubr.bf16.mxu0 0
          %1069 = vmatmul.mubr.bf16.gmra.mxu0 %v1034
          %v1070 = vpop.f32.mrf.mxu0
          %v1071 = vadd.f32 0.0, %v1070
          %v1072 = vpop.f32.mrf.mxu0
          %v1073 = vpop.f32.mrf.mxu0
          %v1074 = vadd.f32 0.0, %v1073
          %v1075 = vpop.f32.mrf.mxu0
          %1076 = vdwg.mxu0
          %v1077 = vadd.f32 %v1026, %v1071
          %v1078 = vadd.f32 %v1027, %v1074
          %1079 = vst.msk [vmem:[#allocation5] sm:$0xff] %vm902, %v1077
          %1080 = vst.msk [vmem:[#allocation5 + $0x8] sm:$0xff] %vm902, %v1078
          %1081 = vst.msk [vmem:[#allocation3] sm:$0xff] %vm1011, %v975
          %1082 = vst.msk [vmem:[#allocation3 + $0x8] sm:$0xff] %vm1011, %v976
        $region44: #{tpu_custom_call.1} parent=35 // pred_fallthru
          _
        // Predicated region
        $region45: #{tpu_custom_call.1} parent=35 // pred_check
          %p1083 = pneg %p277
        $region46: #{tpu_custom_call.1} parent=35 // pred_check_branch
          %1085 = sbr.rel (%p1083) target = $region48
        $region47: #{tpu_custom_call.1} parent=35 // pred_region
          %v1086 = vld [vmem:[#allocation4] sm:$0xff]
          %v1087 = vld [vmem:[#allocation4 + $0x8] sm:$0xff]
          %v1088 = vrcp.pop %v1086
          %v1089 = vrcp.pop %v1087
          %v1090 = vld [vmem:[#allocation5] sm:$0xff]
          %v1091 = vld [vmem:[#allocation5 + $0x8] sm:$0xff]
          %1093 = vset.pattern.permute.xlu0 0
          %1094 = vperm.xlu0 %1093, %v1088
          %v1095 = vpop.permute.xlu0 %1094
          %1098 = vset.pattern.permute.xlu0 0
          %1099 = vperm.xlu0 %1098, %v1089
          %v1100 = vpop.permute.xlu0 %1099
          %v1102 = vmul.f32 %v1090, %v1095
          %v1103 = vmul.f32 %v1091, %v1100
          %vm1104 = vcmask 523264
          %1105 = vst.msk [vmem:[%s252] sm:$0xff] %vm1104, %v1102
          %1106 = vst.msk [vmem:[%s252 + $0x8] sm:$0xff] %vm1104, %v1103
        $region48: #{tpu_custom_call.1} parent=35 // pred_fallthru
          _
        %s1107 = sand.u32 %s145, 1
        %s1108 = scalar_lea.sflag [#allocation7], %s1107
        %s1109 = sand.u32 %s145, 1
        %s1110 = smul.addr %s1109, 16
        %s1111 = scalar_lea.vmem [#allocation6], %s1110
        // Predicated region
        $region49: #{tpu_custom_call.1} parent=35 // pred_check
          %p1112 = pneg %p155
        $region50: #{tpu_custom_call.1} parent=35 // pred_check_branch
          %1114 = sbr.rel (%p1112) target = $region52
        $region51: #{tpu_custom_call.1} parent=35 // pred_region
          %s1115 = smul.u32 2, %s24
          %s1117 = ssub.s32 256, 256
          %1118 = vsyncadd %s1108, %s1117
          %s1119 = smul.addr %s23, 2
          %s1120 = sadd.s32 %s1115, %s1119
          %s1121 = smul.addr %s1120, 128
          %s1122 = scalar_lea.hbm %s4, %s1121
          %s1123 = sshll.u32 %s1111, 4
          %s1124 = int_to_ptr.vmem [resolvable:$true] %s1123
          %1129 = dma.vmem_to_hbm [thread:$0]  %s1124, 256, %s1122, %s1108, 128, 128, 8
        $region52: #{tpu_custom_call.1} parent=35 // pred_fallthru
          _
      $region36: #{tpu_custom_call.1} parent=5 // pred_fallthru
        _
      %p1130 = scmp.le.s32.totalorder 2, %s13
      // Predicated region
      $region53: #{tpu_custom_call.1} parent=5 // pred_check
        %p1131 = pneg %p1130
      $region54: #{tpu_custom_call.1} parent=5 // pred_check_branch
        %1133 = sbr.rel (%p1131) target = $region56
      $region55: #{tpu_custom_call.1} parent=5 // pred_region
        %s1134 = ssub.s32 %s13, 2
        // Predicated region
        $region57: #{tpu_custom_call.1} parent=55 // pred_check
          %p1135 = pneg %p161
        $region58: #{tpu_custom_call.1} parent=55 // pred_check_branch
          %1137 = sbr.rel (%p1135) target = $region60
        $region59: #{tpu_custom_call.1} parent=55 // pred_region
          %s1138 = sand.u32 %s146, 1
          %s1139 = scalar_lea.sflag [#allocation7], %s1138
          %s1140 = sand.u32 %s146, 1
          %s1141 = smul.addr %s1140, 16
          %s1142 = scalar_lea.vmem [#allocation6], %s1141
          %1143 = dma.done %s1139, 256
        $region60: #{tpu_custom_call.1} parent=55 // pred_fallthru
          _
      $region56: #{tpu_custom_call.1} parent=5 // pred_fallthru
        _
    $region6: #{tpu_custom_call.1} parent=1 // loop_footer
      %s17 = sadd.s32 1, %s13
    $region7: #{tpu_custom_call.1} parent=1 // loop_footer_branch
      %12 = sbr.rel target = $region3
    $region8: #{tpu_custom_call.1} parent=1 // loop_exit
      _
    %1144 = vsyncpa [#allocation7], 1
    %s1145 = scalar_lea.sflag [#allocation7], 1
    %1146 = vsyncpa %s1145, 1

</llo_original>
